<compile_context>
chip_gen: v6e
topology: v6e:2x2x1
jax: 0.10.0
libtpu: 0.0.40
codegen_flags: <defaults>
</compile_context>

<pallas_src>
import jax
import jax.numpy as jnp
from jax.experimental import pallas as pl
from jax.experimental.pallas import tpu as pltpu

HIDDEN = 256


def _round_up(x, m):
    return ((x + m - 1) // m) * m


def mlp_kernel(x_ref, w1_ref, b12_ref, w2_ref, w3_ref, b3_ref, o_ref):
    cdt = w1_ref.dtype                       # MXU compute dtype (bf16)
    x = x_ref[...].astype(cdt)               # no-op if the caller passes bf16
    b12 = b12_ref[...]                       # [2, HIDDEN] f32 (b1 row 0, b2 row 1)

    h1 = jnp.dot(x, w1_ref[...], preferred_element_type=jnp.float32) + b12[0:1, :]
    h1 = jnp.maximum(h1, 0.0)

    h2 = jnp.dot(h1.astype(cdt), w2_ref[...], preferred_element_type=jnp.float32) + b12[1:2, :]
    h2 = jnp.maximum(h2, 0.0)

    y = jnp.dot(h2.astype(cdt), w3_ref[...], preferred_element_type=jnp.float32) + b3_ref[...]
    o_ref[...] = y.astype(o_ref.dtype)       # exact act_dim columns (no padding)


def agent_forward(x, params, *, tb=2048):
    """x: [B, obs_dim] (f32 or bf16). params: dict of w1,b1,w2,b2,w3,b3
    (weights stored [in, out], equivalent to PyTorch's x @ W.T)."""
    B, obs_dim = x.shape
    w1, w2, w3 = params["w1"], params["w2"], params["w3"]
    b1, b2, b3 = params["b1"], params["b2"], params["b3"]
    hidden = w1.shape[1]
    act_dim = w3.shape[1]

    # Pack the two hidden-layer biases into one resident input (fewer tiny DMAs).
    b12 = jnp.concatenate([b1, b2], axis=0).astype(jnp.float32)   # [2, HIDDEN]
    b3 = b3.astype(jnp.float32)                                   # [1, act_dim]

    # --- batch tiling ---------------------------------------------------------
    # Derive TB from B to minimize batch padding; keep >=2 tiles whenever
    # B > 8 so v7x's two TensorCores both get work on the "parallel" axis;
    # cap tiles at `tb` rows (working set stays well under scoped VMEM).
    if B <= 8:
        TB = _round_up(max(B, 1), 8)
    else:
        n_tiles = max(2, pl.cdiv(B, tb))
        TB = _round_up(pl.cdiv(B, n_tiles), 8)
    B_pad = _round_up(B, TB)
    if B_pad != B:
        x = jnp.pad(x, ((0, B_pad - B), (0, 0)))
    grid = (B_pad // TB,)

    out = pl.pallas_call(
        mlp_kernel,
        out_shape=jax.ShapeDtypeStruct((B_pad, act_dim), jnp.float32),
        grid=grid,
        in_specs=[
            pl.BlockSpec((TB, obs_dim), lambda i: (i, 0)),        # x: tiled over batch
            pl.BlockSpec((obs_dim, hidden), lambda i: (0, 0)),    # w1: resident
            pl.BlockSpec((2, hidden), lambda i: (0, 0)),          # b1|b2 packed: resident
            pl.BlockSpec((hidden, hidden), lambda i: (0, 0)),     # w2: resident
            pl.BlockSpec((hidden, act_dim), lambda i: (0, 0)),    # w3: resident
            pl.BlockSpec((1, act_dim), lambda i: (0, 0)),         # b3: resident
        ],
        # Lane-masked store (act_dim < 128) amortized over a large TB; writing
        # true act_dim cuts output HBM traffic ~16x vs. padding to 128.
        out_specs=pl.BlockSpec((TB, act_dim), lambda i: (i, 0)),
        compiler_params=pltpu.CompilerParams(
            dimension_semantics=("parallel",),   # v7x: split batch tiles across both TCs
        ),
    )(x, w1, b12, w2, w3, b3)

    # Only the (minimized) batch pad remains; slicing (B, act_dim) is tiny.
    return out if B_pad == B else out[:B]


def init_params(key, obs_dim, act_dim, weight_dtype=jnp.bfloat16):
    """Deterministic init mimicking PyTorch's default Linear init
    (uniform in ±1/sqrt(fan_in)). Weights stored [in, out], bf16 for the MXU."""
    ks = jax.random.split(key, 6)

    def linear(kw, kb, fan_in, fan_out):
        bound = 1.0 / jnp.sqrt(jnp.float32(fan_in))
        w = jax.random.uniform(kw, (fan_in, fan_out), jnp.float32, -bound, bound)
        b = jax.random.uniform(kb, (1, fan_out), jnp.float32, -bound, bound)
        return w.astype(weight_dtype), b

    w1, b1 = linear(ks[0], ks[1], obs_dim, HIDDEN)
    w2, b2 = linear(ks[2], ks[3], HIDDEN, HIDDEN)
    w3, b3 = linear(ks[4], ks[5], HIDDEN, act_dim)
    return {"w1": w1, "b1": b1, "w2": w2, "b2": b2, "w3": w3, "b3": b3}


def reference_forward(x, p):
    # f32 reference with the (bf16-stored) weights cast back to f32.
    w1 = p["w1"].astype(jnp.float32)
    w2 = p["w2"].astype(jnp.float32)
    w3 = p["w3"].astype(jnp.float32)
    h1 = jnp.maximum(x @ w1 + p["b1"], 0.0)
    h2 = jnp.maximum(h1 @ w2 + p["b2"], 0.0)
    return h2 @ w3 + p["b3"]


if __name__ == "__main__":
    key = jax.random.PRNGKey(0)
    k_x, k_x2, k_x3, k_p = jax.random.split(key, 4)

    obs_dim, act_dim = 32, 8  # small env: obs=32-dim, action=8-dim
    params = init_params(k_p, obs_dim, act_dim)

    # Small-batch case (single grid step).
    x_small = jax.random.normal(k_x, (8, obs_dim), jnp.float32)
    out_small = jax.block_until_ready(agent_forward(x_small, params))
    ref_small = reference_forward(x_small, params)
    assert out_small.shape == (8, act_dim)
    assert jnp.allclose(out_small, ref_small, atol=5e-2, rtol=5e-2)

    # Larger batch exercises the multi-tile grid path (2 tiles of 256 rows).
    x_big = jax.random.normal(k_x2, (512, obs_dim), jnp.float32)
    out_big = jax.block_until_ready(agent_forward(x_big, params))
    ref_big = reference_forward(x_big, params)
    assert out_big.shape == (512, act_dim)
    assert jnp.allclose(out_big, ref_big, atol=5e-2, rtol=5e-2)

    # Awkward batch size: tile sizing derived from B keeps padding minimal
    # (B=300 -> TB=152, B_pad=304, 2 tiles).
    x_odd = jax.random.normal(k_x3, (300, obs_dim), jnp.float32)
    out_odd = jax.block_until_ready(agent_forward(x_odd, params))
    ref_odd = reference_forward(x_odd, params)
    assert out_odd.shape == (300, act_dim)
    assert jnp.allclose(out_odd, ref_odd, atol=5e-2, rtol=5e-2)

    print("KERNEL_OK")
</pallas_src>

<mosaic_0001>
module attributes {stable_mosaic.version = 11 : i64} {
  func.func @mlp_kernel(%arg0: i32, %arg1: memref<8x32xf32, #tpu.memory_space<vmem>>, %arg2: memref<32x256xbf16, #tpu.memory_space<vmem>>, %arg3: memref<2x256xf32, #tpu.memory_space<vmem>>, %arg4: memref<256x256xbf16, #tpu.memory_space<vmem>>, %arg5: memref<256x8xbf16, #tpu.memory_space<vmem>>, %arg6: memref<1x8xf32, #tpu.memory_space<vmem>>, %arg7: memref<8x8xf32, #tpu.memory_space<vmem>>) attributes {dimension_semantics = [#tpu.dimension_semantics<parallel>], iteration_bounds = array<i64: 1>, scalar_prefetch = 0 : i64, scratch_operands = 0 : i64, tpu.core_type = #tpu.core_type<tc>, window_params = [{transform_indices = @transform_0, window_bounds = array<i64: 8, 32>}, {pipeline_mode = #tpu.pipeline_mode<synchronous>, transform_indices = @transform_1, window_bounds = array<i64: 32, 256>}, {pipeline_mode = #tpu.pipeline_mode<synchronous>, transform_indices = @transform_2, window_bounds = array<i64: 2, 256>}, {pipeline_mode = #tpu.pipeline_mode<synchronous>, transform_indices = @transform_3, window_bounds = array<i64: 256, 256>}, {pipeline_mode = #tpu.pipeline_mode<synchronous>, transform_indices = @transform_4, window_bounds = array<i64: 256, 8>}, {pipeline_mode = #tpu.pipeline_mode<synchronous>, transform_indices = @transform_5, window_bounds = array<i64: 1, 8>}, {transform_indices = @transform_6, window_bounds = array<i64: 8, 8>}]} {
    %c0 = arith.constant 0 : index
    %c0_0 = arith.constant 0 : index
    %0 = vector.load %arg1[%c0, %c0_0] : memref<8x32xf32, #tpu.memory_space<vmem>>, vector<8x32xf32>
    %1 = arith.truncf %0 : vector<8x32xf32> to vector<8x32xbf16>
    %c0_1 = arith.constant 0 : index
    %c0_2 = arith.constant 0 : index
    %2 = vector.load %arg3[%c0_1, %c0_2] : memref<2x256xf32, #tpu.memory_space<vmem>>, vector<2x256xf32>
    %c0_3 = arith.constant 0 : index
    %c0_4 = arith.constant 0 : index
    %3 = vector.load %arg2[%c0_3, %c0_4] : memref<32x256xbf16, #tpu.memory_space<vmem>>, vector<32x256xbf16>
    %cst = arith.constant dense<0.000000e+00> : vector<8x256xf32>
    %4 = tpu.matmul %1, %3, %cst {dimension_numbers = #tpu.dot_dimension_numbers<[1], [0], [0], [1], [0, 0, 1, 1], [], []>} : vector<8x32xbf16>, vector<32x256xbf16>, vector<8x256xf32> -> vector<8x256xf32>
    %5 = vector.extract_strided_slice %2 {offsets = [0, 0], sizes = [1, 256], strides = [1, 1]} : vector<2x256xf32> to vector<1x256xf32>
    %6 = vector.broadcast %5 : vector<1x256xf32> to vector<8x256xf32>
    %7 = arith.addf %4, %6 : vector<8x256xf32>
    %cst_5 = arith.constant 0.000000e+00 : f32
    %8 = vector.broadcast %cst_5 : f32 to vector<8x256xf32>
    %9 = arith.maximumf %7, %8 : vector<8x256xf32>
    %10 = arith.truncf %9 : vector<8x256xf32> to vector<8x256xbf16>
    %c0_6 = arith.constant 0 : index
    %c0_7 = arith.constant 0 : index
    %11 = vector.load %arg4[%c0_6, %c0_7] : memref<256x256xbf16, #tpu.memory_space<vmem>>, vector<256x256xbf16>
    %cst_8 = arith.constant dense<0.000000e+00> : vector<8x256xf32>
    %12 = tpu.matmul %10, %11, %cst_8 {dimension_numbers = #tpu.dot_dimension_numbers<[1], [0], [0], [1], [0, 0, 1, 1], [], []>} : vector<8x256xbf16>, vector<256x256xbf16>, vector<8x256xf32> -> vector<8x256xf32>
    %13 = vector.extract_strided_slice %2 {offsets = [1, 0], sizes = [1, 256], strides = [1, 1]} : vector<2x256xf32> to vector<1x256xf32>
    %14 = vector.broadcast %13 : vector<1x256xf32> to vector<8x256xf32>
    %15 = arith.addf %12, %14 : vector<8x256xf32>
    %cst_9 = arith.constant 0.000000e+00 : f32
    %16 = vector.broadcast %cst_9 : f32 to vector<8x256xf32>
    %17 = arith.maximumf %15, %16 : vector<8x256xf32>
    %18 = arith.truncf %17 : vector<8x256xf32> to vector<8x256xbf16>
    %c0_10 = arith.constant 0 : index
    %c0_11 = arith.constant 0 : index
    %19 = vector.load %arg5[%c0_10, %c0_11] : memref<256x8xbf16, #tpu.memory_space<vmem>>, vector<256x8xbf16>
    %cst_12 = arith.constant dense<0.000000e+00> : vector<8x8xf32>
    %20 = tpu.matmul %18, %19, %cst_12 {dimension_numbers = #tpu.dot_dimension_numbers<[1], [0], [0], [1], [0, 0, 1, 1], [], []>} : vector<8x256xbf16>, vector<256x8xbf16>, vector<8x8xf32> -> vector<8x8xf32>
    %c0_13 = arith.constant 0 : index
    %c0_14 = arith.constant 0 : index
    %21 = vector.load %arg6[%c0_13, %c0_14] : memref<1x8xf32, #tpu.memory_space<vmem>>, vector<1x8xf32>
    %22 = vector.broadcast %21 : vector<1x8xf32> to vector<8x8xf32>
    %23 = arith.addf %20, %22 : vector<8x8xf32>
    %c0_15 = arith.constant 0 : index
    %c0_16 = arith.constant 0 : index
    %24 = vector.load %arg7[%c0_15, %c0_16] : memref<8x8xf32, #tpu.memory_space<vmem>>, vector<8x8xf32>
    tpu.vector_store %arg7[%c0_15, %c0_16], %23 {strides = array<i32>} : memref<8x8xf32, #tpu.memory_space<vmem>>, vector<8x8xf32>,
    return
  }
  func.func @transform_0(%arg0: i32) -> (i32, i32) {
    %c0_i32 = arith.constant 0 : i32
    %c0_i32_0 = arith.constant 0 : i32
    return %arg0, %c0_i32 : i32, i32
  }
  func.func @transform_1(%arg0: i32) -> (i32, i32) {
    %c0_i32 = arith.constant 0 : i32
    %c0_i32_0 = arith.constant 0 : i32
    %c0_i32_1 = arith.constant 0 : i32
    return %c0_i32, %c0_i32_0 : i32, i32
  }
  func.func @transform_2(%arg0: i32) -> (i32, i32) {
    %c0_i32 = arith.constant 0 : i32
    %c0_i32_0 = arith.constant 0 : i32
    %c0_i32_1 = arith.constant 0 : i32
    return %c0_i32, %c0_i32_0 : i32, i32
  }
  func.func @transform_3(%arg0: i32) -> (i32, i32) {
    %c0_i32 = arith.constant 0 : i32
    %c0_i32_0 = arith.constant 0 : i32
    %c0_i32_1 = arith.constant 0 : i32
    return %c0_i32, %c0_i32_0 : i32, i32
  }
  func.func @transform_4(%arg0: i32) -> (i32, i32) {
    %c0_i32 = arith.constant 0 : i32
    %c0_i32_0 = arith.constant 0 : i32
    %c0_i32_1 = arith.constant 0 : i32
    return %c0_i32, %c0_i32_0 : i32, i32
  }
  func.func @transform_5(%arg0: i32) -> (i32, i32) {
    %c0_i32 = arith.constant 0 : i32
    %c0_i32_0 = arith.constant 0 : i32
    %c0_i32_1 = arith.constant 0 : i32
    return %c0_i32, %c0_i32_0 : i32, i32
  }
  func.func @transform_6(%arg0: i32) -> (i32, i32) {
    %c0_i32 = arith.constant 0 : i32
    %c0_i32_0 = arith.constant 0 : i32
    return %arg0, %c0_i32 : i32, i32
  }
}

</mosaic_0001>

<llo_original>
// kernel: tpu_custom_call.1
$region0: #{tpu_custom_call.1}
  #allocation0 [shape = 'u32[]', space=smem, size = 0x4, offset = 0x4, fixed_abs, tag = 'smem constant byte address 0x4 - core index']
  #allocation1 [shape = 'u32[144,128]{1,0:T(1,128)}', space=vmem, size = 0x12000, scoped, tag = 'internal scratch']
  %s0 = inlined_call_operand.vmem [shape: f32[8,32], index: 0, kind: input, shape index: {}]
  %s1 = inlined_call_operand.vmem [shape: bf16[32,256], index: 1, kind: input, shape index: {}]
  %s2 = inlined_call_operand.vmem [shape: f32[2,256], index: 2, kind: input, shape index: {}]
  %s3 = inlined_call_operand.hbm [shape: bf16[256,256], index: 3, kind: input, shape index: {}]
  %s4 = inlined_call_operand.vmem [shape: bf16[256,8], index: 4, kind: input, shape index: {}]
  %s5 = inlined_call_operand.vmem [shape: f32[1,8], index: 5, kind: input, shape index: {}]
  %s6 = inlined_call_operand.hbm [shape: f32[8,8], index: 6, kind: output, shape index: {}]
  %s7 = sld [smem:[#allocation0]]
  $region38: #{tpu_custom_call.1} parent=0
    _
  %s9 = ssub.s32 1, %s7
  %s10 = scalar_select 0, %s9, %s7
  $region1: #{tpu_custom_call.1} parent=0
    #allocation2 [shape = 'u8[131072]{0}', space=vmem, size = 0x20000, scoped, tag = 'input window, operand 3, single buffered']
    #allocation3 [shape = 's32[1]{0}', space=sflag, size = 0x4, scoped, tag = 'scoped memory for tpu_custom_call.1']
    #allocation4 [shape = 's32[1]{0}', space=sflag, size = 0x4, scoped, tag = 'scoped memory for tpu_custom_call.1']
    #allocation5 [shape = 'u8[4096]{0}', space=vmem, size = 0x1000, scoped, tag = 'output window, operand 0, single buffered']
    %11 = vsyncpa [#allocation3], 0
    %12 = vsyncpa [#allocation4], 0
    // Predicated region
    $region2: #{tpu_custom_call.1} parent=1 // pred_check
      _
    $region3: #{tpu_custom_call.1} parent=1 // pred_check_branch
      %14 = sbr.rel (0) target = $region5
    $region4: #{tpu_custom_call.1} parent=1 // pred_region
      _
    $region5: #{tpu_custom_call.1} parent=1 // pred_fallthru
      _
    // Predicated region
    $region6: #{tpu_custom_call.1} parent=1 // pred_check
      _
    $region7: #{tpu_custom_call.1} parent=1 // pred_check_branch
      %16 = sbr.rel (0) target = $region9
    $region8: #{tpu_custom_call.1} parent=1 // pred_region
      _
    $region9: #{tpu_custom_call.1} parent=1 // pred_fallthru
      _
    // Predicated region
    $region10: #{tpu_custom_call.1} parent=1 // pred_check
      _
    $region11: #{tpu_custom_call.1} parent=1 // pred_check_branch
      %18 = sbr.rel (0) target = $region13
    $region12: #{tpu_custom_call.1} parent=1 // pred_region
      _
    $region13: #{tpu_custom_call.1} parent=1 // pred_fallthru
      _
    // Predicated region
    $region14: #{tpu_custom_call.1} parent=1 // pred_check
      _
    $region15: #{tpu_custom_call.1} parent=1 // pred_check_branch
      %20 = sbr.rel (0) target = $region17
    $region16: #{tpu_custom_call.1} parent=1 // pred_region
      %s22 = ssub.s32 4096, 4096
      %23 = vsyncadd [#allocation3], %s22
      %s24 = sshll.u32 [#allocation2], 4
      %s25 = int_to_ptr.vmem [resolvable:$true] %s24
      %30 = dma.hbm_to_vmem [thread:$0]  %s3, 4096, %s25, [#allocation3], 128, 128, 8
    $region17: #{tpu_custom_call.1} parent=1 // pred_fallthru
      _
    // Predicated region
    $region18: #{tpu_custom_call.1} parent=1 // pred_check
      _
    $region19: #{tpu_custom_call.1} parent=1 // pred_check_branch
      %32 = sbr.rel (0) target = $region21
    $region20: #{tpu_custom_call.1} parent=1 // pred_region
      _
    $region21: #{tpu_custom_call.1} parent=1 // pred_fallthru
      _
    // Predicated region
    $region22: #{tpu_custom_call.1} parent=1 // pred_check
      _
    $region23: #{tpu_custom_call.1} parent=1 // pred_check_branch
      %34 = sbr.rel (0) target = $region25
    $region24: #{tpu_custom_call.1} parent=1 // pred_region
      _
    $region25: #{tpu_custom_call.1} parent=1 // pred_fallthru
      _
    // Predicated region
    $region26: #{tpu_custom_call.1} parent=1 // pred_check
      _
    $region27: #{tpu_custom_call.1} parent=1 // pred_check_branch
      %36 = sbr.rel (0) target = $region29
    $region28: #{tpu_custom_call.1} parent=1 // pred_region
      %37 = dma.done [#allocation3], 4096
    $region29: #{tpu_custom_call.1} parent=1 // pred_fallthru
      _
    %v39 = vld [vmem:[%s0] sm:$0xff]
    %v40 = vpack.c.bf16 %v39, %v39
    %v41 = vld [vmem:[%s2] sm:$0xf]
    %v42 = vld [vmem:[%s1] sm:$0xff]
    %v43 = vld [vmem:[%s1 + $0x8] sm:$0xff]
    %v44 = vld [vmem:[%s1 + $0x10] sm:$0xff]
    %v45 = vld [vmem:[%s1 + $0x18] sm:$0xff]
    %v47 = vlaneseq
    %v48 = vshrl.u32 %v47, 7
    %v49 = vsub.s32 0, %v48
    %v50 = vrot.slane %v41, %v49
    %v51 = vlaneseq
    %v52 = vshrl.u32 %v51, 7
    %v53 = vsub.s32 2, %v52
    %v54 = vrot.slane %v41, %v53
    %v57 = vlaneseq
    %v58 = vshrl.u32 %v57, 7
    %v59 = vsub.s32 0, %v58
    %v60 = vrot.slane %v50, %v59
    %v61 = vlaneseq
    %v62 = vshrl.u32 %v61, 7
    %v63 = vsub.s32 0, %v62
    %v64 = vrot.slane %v54, %v63
    %v69 = vunpack.c.l.b16 %v42
    %v70 = vunpack.c.h.b16 %v42
    %v71 = vunpack.c.l.b16 %v43
    %v72 = vunpack.c.h.b16 %v43
    %v73 = vunpack.c.l.b16 %v44
    %v74 = vunpack.c.h.b16 %v44
    %v75 = vunpack.c.l.b16 %v45
    %v76 = vunpack.c.h.b16 %v45
    %v77 = vpack.c.b16 %v71, %v69
    %v78 = vpack.c.b16 %v72, %v70
    %v79 = vpack.c.b16 %v75, %v73
    %v80 = vpack.c.b16 %v76, %v74
    %vm85 = vcmask 261120
    %v87 = vsel %vm85, %v40, 0
    %89 = vmatprep.subr.bf16.mxu0 0
    %90 = vmatpush1.bf16.msra.mxu0 0
    %91 = vmatprep.subr.bf16.mxu0 0
    %92 = vmatpush1.bf16.msra.mxu0 0
    %93 = vmatprep.subr.bf16.mxu0 0
    %94 = vmatpush1.bf16.msra.mxu0 0
    %95 = vmatprep.subr.bf16.mxu0 0
    %96 = vmatpush1.bf16.msra.mxu0 0
    %97 = vmatprep.subr.bf16.mxu0 0
    %98 = vmatpush1.bf16.msra.mxu0 0
    %99 = vmatprep.subr.bf16.mxu0 0
    %100 = vmatpush1.bf16.msra.mxu0 0
    %101 = vmatprep.subr.bf16.mxu0 %v80
    %102 = vmatpush1.bf16.msra.mxu0 %v79
    %103 = vmatprep.subr.bf16.mxu0 %v78
    %104 = vmatpush1.bf16.msra.mxu0 %v77
    %105 = vmatprep.subr.bf16.mxu0 0
    %106 = vmatpush2.bf16.msra.mxu0 0
    %107 = vmatprep.subr.bf16.mxu0 0
    %108 = vmatpush2.bf16.msra.mxu0 0
    %109 = vmatprep.subr.bf16.mxu0 0
    %110 = vmatpush2.bf16.msra.mxu0 0
    %111 = vmatprep.subr.bf16.mxu0 0
    %112 = vmatpush2.bf16.msra.mxu0 0
    %113 = vmatprep.subr.bf16.mxu0 0
    %114 = vmatpush2.bf16.msra.mxu0 0
    %115 = vmatprep.subr.bf16.mxu0 0
    %116 = vmatpush2.bf16.msra.mxu0 0
    %117 = vmatprep.subr.bf16.mxu0 0
    %118 = vmatpush2.bf16.msra.mxu0 0
    %119 = vmatprep.subr.bf16.mxu0 0
    %120 = vmatpush2.bf16.msra.mxu0 0
    %121 = vmatprep.mubr.bf16.mxu0 0
    %122 = vmatmul.mubr.bf16.gmra.mxu0 %v87
    %v123 = vpop.f32.mrf.mxu0
    %v124 = vadd.f32 %v60, %v123
    %v125 = vpop.f32.mrf.mxu0
    %v126 = vadd.f32 %v64, %v125
    %v127 = vpop.f32.mrf.mxu0
    %v128 = vpop.f32.mrf.mxu0
    %129 = vdwg.mxu0
    %v130 = vmax.f32 %v124, 0.0
    %v131 = vmax.f32 %v126, 0.0
    %v132 = vpack.c.bf16 %v130, %v130
    %v133 = vpack.c.bf16 %v131, %v131
    %v134 = vld [vmem:[#allocation2] sm:$0xff]
    %v135 = vld [vmem:[#allocation2 + $0x8] sm:$0xff]
    %v136 = vld [vmem:[#allocation2 + $0x10] sm:$0xff]
    %v137 = vld [vmem:[#allocation2 + $0x18] sm:$0xff]
    %v138 = vld [vmem:[#allocation2 + $0x20] sm:$0xff]
    %v139 = vld [vmem:[#allocation2 + $0x28] sm:$0xff]
    %v140 = vld [vmem:[#allocation2 + $0x30] sm:$0xff]
    %v141 = vld [vmem:[#allocation2 + $0x38] sm:$0xff]
    %v142 = vld [vmem:[#allocation2 + $0x40] sm:$0xff]
    %v143 = vld [vmem:[#allocation2 + $0x48] sm:$0xff]
    %v144 = vld [vmem:[#allocation2 + $0x50] sm:$0xff]
    %v145 = vld [vmem:[#allocation2 + $0x58] sm:$0xff]
    %v146 = vld [vmem:[#allocation2 + $0x60] sm:$0xff]
    %v147 = vld [vmem:[#allocation2 + $0x68] sm:$0xff]
    %v148 = vld [vmem:[#allocation2 + $0x70] sm:$0xff]
    %v149 = vld [vmem:[#allocation2 + $0x78] sm:$0xff]
    %v150 = vld [vmem:[#allocation2 + $0x80] sm:$0xff]
    %v151 = vld [vmem:[#allocation2 + $0x88] sm:$0xff]
    %v152 = vld [vmem:[#allocation2 + $0x90] sm:$0xff]
    %v153 = vld [vmem:[#allocation2 + $0x98] sm:$0xff]
    %v154 = vld [vmem:[#allocation2 + $0xa0] sm:$0xff]
    %v155 = vld [vmem:[#allocation2 + $0xa8] sm:$0xff]
    %v156 = vld [vmem:[#allocation2 + $0xb0] sm:$0xff]
    %v157 = vld [vmem:[#allocation2 + $0xb8] sm:$0xff]
    %v158 = vld [vmem:[#allocation2 + $0xc0] sm:$0xff]
    %v159 = vld [vmem:[#allocation2 + $0xc8] sm:$0xff]
    %v160 = vld [vmem:[#allocation2 + $0xd0] sm:$0xff]
    %v161 = vld [vmem:[#allocation2 + $0xd8] sm:$0xff]
    %v162 = vld [vmem:[#allocation2 + $0xe0] sm:$0xff]
    %v163 = vld [vmem:[#allocation2 + $0xe8] sm:$0xff]
    %v164 = vld [vmem:[#allocation2 + $0xf0] sm:$0xff]
    %v165 = vld [vmem:[#allocation2 + $0xf8] sm:$0xff]
    %v166 = vlaneseq
    %v167 = vshrl.u32 %v166, 7
    %v168 = vsub.s32 1, %v167
    %v169 = vrot.slane %v41, %v168
    %v170 = vlaneseq
    %v171 = vshrl.u32 %v170, 7
    %v172 = vsub.s32 3, %v171
    %v173 = vrot.slane %v41, %v172
    %v176 = vlaneseq
    %v177 = vshrl.u32 %v176, 7
    %v178 = vsub.s32 1, %v177
    %v179 = vrot.slane %v169, %v178
    %v180 = vlaneseq
    %v181 = vshrl.u32 %v180, 7
    %v182 = vsub.s32 1, %v181
    %v183 = vrot.slane %v173, %v182
    %v216 = vunpack.c.l.b16 %v134
    %v217 = vunpack.c.h.b16 %v134
    %v218 = vunpack.c.l.b16 %v135
    %v219 = vunpack.c.h.b16 %v135
    %v220 = vunpack.c.l.b16 %v136
    %v221 = vunpack.c.h.b16 %v136
    %v222 = vunpack.c.l.b16 %v137
    %v223 = vunpack.c.h.b16 %v137
    %v224 = vunpack.c.l.b16 %v138
    %v225 = vunpack.c.h.b16 %v138
    %v226 = vunpack.c.l.b16 %v139
    %v227 = vunpack.c.h.b16 %v139
    %v228 = vunpack.c.l.b16 %v140
    %v229 = vunpack.c.h.b16 %v140
    %v230 = vunpack.c.l.b16 %v141
    %v231 = vunpack.c.h.b16 %v141
    %v232 = vunpack.c.l.b16 %v142
    %v233 = vunpack.c.h.b16 %v142
    %v234 = vunpack.c.l.b16 %v143
    %v235 = vunpack.c.h.b16 %v143
    %v236 = vunpack.c.l.b16 %v144
    %v237 = vunpack.c.h.b16 %v144
    %v238 = vunpack.c.l.b16 %v145
    %v239 = vunpack.c.h.b16 %v145
    %v240 = vunpack.c.l.b16 %v146
    %v241 = vunpack.c.h.b16 %v146
    %v242 = vunpack.c.l.b16 %v147
    %v243 = vunpack.c.h.b16 %v147
    %v244 = vunpack.c.l.b16 %v148
    %v245 = vunpack.c.h.b16 %v148
    %v246 = vunpack.c.l.b16 %v149
    %v247 = vunpack.c.h.b16 %v149
    %v248 = vunpack.c.l.b16 %v150
    %v249 = vunpack.c.h.b16 %v150
    %v250 = vunpack.c.l.b16 %v151
    %v251 = vunpack.c.h.b16 %v151
    %v252 = vunpack.c.l.b16 %v152
    %v253 = vunpack.c.h.b16 %v152
    %v254 = vunpack.c.l.b16 %v153
    %v255 = vunpack.c.h.b16 %v153
    %v256 = vunpack.c.l.b16 %v154
    %v257 = vunpack.c.h.b16 %v154
    %v258 = vunpack.c.l.b16 %v155
    %v259 = vunpack.c.h.b16 %v155
    %v260 = vunpack.c.l.b16 %v156
    %v261 = vunpack.c.h.b16 %v156
    %v262 = vunpack.c.l.b16 %v157
    %v263 = vunpack.c.h.b16 %v157
    %v264 = vunpack.c.l.b16 %v158
    %v265 = vunpack.c.h.b16 %v158
    %v266 = vunpack.c.l.b16 %v159
    %v267 = vunpack.c.h.b16 %v159
    %v268 = vunpack.c.l.b16 %v160
    %v269 = vunpack.c.h.b16 %v160
    %v270 = vunpack.c.l.b16 %v161
    %v271 = vunpack.c.h.b16 %v161
    %v272 = vunpack.c.l.b16 %v162
    %v273 = vunpack.c.h.b16 %v162
    %v274 = vunpack.c.l.b16 %v163
    %v275 = vunpack.c.h.b16 %v163
    %v276 = vunpack.c.l.b16 %v164
    %v277 = vunpack.c.h.b16 %v164
    %v278 = vunpack.c.l.b16 %v165
    %v279 = vunpack.c.h.b16 %v165
    %v280 = vpack.c.b16 %v218, %v216
    %v281 = vpack.c.b16 %v219, %v217
    %v282 = vpack.c.b16 %v222, %v220
    %v283 = vpack.c.b16 %v223, %v221
    %v284 = vpack.c.b16 %v226, %v224
    %v285 = vpack.c.b16 %v227, %v225
    %v286 = vpack.c.b16 %v230, %v228
    %v287 = vpack.c.b16 %v231, %v229
    %v288 = vpack.c.b16 %v234, %v232
    %v289 = vpack.c.b16 %v235, %v233
    %v290 = vpack.c.b16 %v238, %v236
    %v291 = vpack.c.b16 %v239, %v237
    %v292 = vpack.c.b16 %v242, %v240
    %v293 = vpack.c.b16 %v243, %v241
    %v294 = vpack.c.b16 %v246, %v244
    %v295 = vpack.c.b16 %v247, %v245
    %v296 = vpack.c.b16 %v250, %v248
    %v297 = vpack.c.b16 %v251, %v249
    %v298 = vpack.c.b16 %v254, %v252
    %v299 = vpack.c.b16 %v255, %v253
    %v300 = vpack.c.b16 %v258, %v256
    %v301 = vpack.c.b16 %v259, %v257
    %v302 = vpack.c.b16 %v262, %v260
    %v303 = vpack.c.b16 %v263, %v261
    %v304 = vpack.c.b16 %v266, %v264
    %v305 = vpack.c.b16 %v267, %v265
    %v306 = vpack.c.b16 %v270, %v268
    %v307 = vpack.c.b16 %v271, %v269
    %v308 = vpack.c.b16 %v274, %v272
    %v309 = vpack.c.b16 %v275, %v273
    %v310 = vpack.c.b16 %v278, %v276
    %v311 = vpack.c.b16 %v279, %v277
    %344 = vmatprep.subr.bf16.mxu0 %v295
    %345 = vmatpush1.bf16.msra.mxu0 %v294
    %346 = vmatprep.subr.bf16.mxu0 %v293
    %347 = vmatpush1.bf16.msra.mxu0 %v292
    %348 = vmatprep.subr.bf16.mxu0 %v291
    %349 = vmatpush1.bf16.msra.mxu0 %v290
    %350 = vmatprep.subr.bf16.mxu0 %v289
    %351 = vmatpush1.bf16.msra.mxu0 %v288
    %352 = vmatprep.subr.bf16.mxu0 %v287
    %353 = vmatpush1.bf16.msra.mxu0 %v286
    %354 = vmatprep.subr.bf16.mxu0 %v285
    %355 = vmatpush1.bf16.msra.mxu0 %v284
    %356 = vmatprep.subr.bf16.mxu0 %v283
    %357 = vmatpush1.bf16.msra.mxu0 %v282
    %358 = vmatprep.subr.bf16.mxu0 %v281
    %359 = vmatpush1.bf16.msra.mxu0 %v280
    %360 = vmatprep.subr.bf16.mxu0 %v311
    %361 = vmatpush2.bf16.msra.mxu0 %v310
    %362 = vmatprep.subr.bf16.mxu0 %v309
    %363 = vmatpush2.bf16.msra.mxu0 %v308
    %364 = vmatprep.subr.bf16.mxu0 %v307
    %365 = vmatpush2.bf16.msra.mxu0 %v306
    %366 = vmatprep.subr.bf16.mxu0 %v305
    %367 = vmatpush2.bf16.msra.mxu0 %v304
    %368 = vmatprep.subr.bf16.mxu0 %v303
    %369 = vmatpush2.bf16.msra.mxu0 %v302
    %370 = vmatprep.subr.bf16.mxu0 %v301
    %371 = vmatpush2.bf16.msra.mxu0 %v300
    %372 = vmatprep.subr.bf16.mxu0 %v299
    %373 = vmatpush2.bf16.msra.mxu0 %v298
    %374 = vmatprep.subr.bf16.mxu0 %v297
    %375 = vmatpush2.bf16.msra.mxu0 %v296
    %376 = vmatprep.mubr.bf16.mxu0 %v133
    %377 = vmatmul.mubr.bf16.gmra.mxu0 %v132
    %v378 = vpop.f32.mrf.mxu0
    %v379 = vadd.f32 %v179, %v378
    %v380 = vpop.f32.mrf.mxu0
    %v381 = vadd.f32 %v183, %v380
    %v382 = vpop.f32.mrf.mxu0
    %v383 = vpop.f32.mrf.mxu0
    %384 = vdwg.mxu0
    %v385 = vmax.f32 %v379, 0.0
    %v386 = vmax.f32 %v381, 0.0
    %v387 = vpack.c.bf16 %v385, %v385
    %v388 = vpack.c.bf16 %v386, %v386
    %v389 = vld [vmem:[%s4] sm:$0xf]
    %v390 = vld [vmem:[%s4 + $0x4] sm:$0xf]
    %v391 = vld [vmem:[%s4 + $0x8] sm:$0xf]
    %v392 = vld [vmem:[%s4 + $0xc] sm:$0xf]
    %v393 = vld [vmem:[%s4 + $0x10] sm:$0xf]
    %v394 = vld [vmem:[%s4 + $0x14] sm:$0xf]
    %v395 = vld [vmem:[%s4 + $0x18] sm:$0xf]
    %v396 = vld [vmem:[%s4 + $0x1c] sm:$0xf]
    %v397 = vld [vmem:[%s4 + $0x20] sm:$0xf]
    %v398 = vld [vmem:[%s4 + $0x24] sm:$0xf]
    %v399 = vld [vmem:[%s4 + $0x28] sm:$0xf]
    %v400 = vld [vmem:[%s4 + $0x2c] sm:$0xf]
    %v401 = vld [vmem:[%s4 + $0x30] sm:$0xf]
    %v402 = vld [vmem:[%s4 + $0x34] sm:$0xf]
    %v403 = vld [vmem:[%s4 + $0x38] sm:$0xf]
    %v404 = vld [vmem:[%s4 + $0x3c] sm:$0xf]
    %v405 = vld [vmem:[%s4 + $0x40] sm:$0xf]
    %v406 = vld [vmem:[%s4 + $0x44] sm:$0xf]
    %v407 = vld [vmem:[%s4 + $0x48] sm:$0xf]
    %v408 = vld [vmem:[%s4 + $0x4c] sm:$0xf]
    %v409 = vld [vmem:[%s4 + $0x50] sm:$0xf]
    %v410 = vld [vmem:[%s4 + $0x54] sm:$0xf]
    %v411 = vld [vmem:[%s4 + $0x58] sm:$0xf]
    %v412 = vld [vmem:[%s4 + $0x5c] sm:$0xf]
    %v413 = vld [vmem:[%s4 + $0x60] sm:$0xf]
    %v414 = vld [vmem:[%s4 + $0x64] sm:$0xf]
    %v415 = vld [vmem:[%s4 + $0x68] sm:$0xf]
    %v416 = vld [vmem:[%s4 + $0x6c] sm:$0xf]
    %v417 = vld [vmem:[%s4 + $0x70] sm:$0xf]
    %v418 = vld [vmem:[%s4 + $0x74] sm:$0xf]
    %v419 = vld [vmem:[%s4 + $0x78] sm:$0xf]
    %v420 = vld [vmem:[%s4 + $0x7c] sm:$0xf]
    %v421 = vld [vmem:[%s5] sm:$0x1]
    %v423 = vlaneseq
    %v424 = vshrl.u32 %v423, 7
    %v425 = vsub.s32 0, %v424
    %v426 = vrot.slane %v421, %v425
    %v460 = vunpack.c.l.b16 %v389
    %v461 = vunpack.c.l.b16 %v390
    %v462 = vunpack.c.l.b16 %v391
    %v463 = vunpack.c.l.b16 %v392
    %v464 = vunpack.c.l.b16 %v393
    %v465 = vunpack.c.l.b16 %v394
    %v466 = vunpack.c.l.b16 %v395
    %v467 = vunpack.c.l.b16 %v396
    %v468 = vunpack.c.l.b16 %v397
    %v469 = vunpack.c.l.b16 %v398
    %v470 = vunpack.c.l.b16 %v399
    %v471 = vunpack.c.l.b16 %v400
    %v472 = vunpack.c.l.b16 %v401
    %v473 = vunpack.c.l.b16 %v402
    %v474 = vunpack.c.l.b16 %v403
    %v475 = vunpack.c.l.b16 %v404
    %v476 = vunpack.c.l.b16 %v405
    %v477 = vunpack.c.l.b16 %v406
    %v478 = vunpack.c.l.b16 %v407
    %v479 = vunpack.c.l.b16 %v408
    %v480 = vunpack.c.l.b16 %v409
    %v481 = vunpack.c.l.b16 %v410
    %v482 = vunpack.c.l.b16 %v411
    %v483 = vunpack.c.l.b16 %v412
    %v484 = vunpack.c.l.b16 %v413
    %v485 = vunpack.c.l.b16 %v414
    %v486 = vunpack.c.l.b16 %v415
    %v487 = vunpack.c.l.b16 %v416
    %v488 = vunpack.c.l.b16 %v417
    %v489 = vunpack.c.l.b16 %v418
    %v490 = vunpack.c.l.b16 %v419
    %v491 = vunpack.c.l.b16 %v420
    %v492 = vpack.c.b16 %v461, %v460
    %v493 = vpack.c.b16 %v463, %v462
    %v494 = vpack.c.b16 %v465, %v464
    %v495 = vpack.c.b16 %v467, %v466
    %v496 = vpack.c.b16 %v469, %v468
    %v497 = vpack.c.b16 %v471, %v470
    %v498 = vpack.c.b16 %v473, %v472
    %v499 = vpack.c.b16 %v475, %v474
    %v500 = vpack.c.b16 %v477, %v476
    %v501 = vpack.c.b16 %v479, %v478
    %v502 = vpack.c.b16 %v481, %v480
    %v503 = vpack.c.b16 %v483, %v482
    %v504 = vpack.c.b16 %v485, %v484
    %v505 = vpack.c.b16 %v487, %v486
    %v506 = vpack.c.b16 %v489, %v488
    %v507 = vpack.c.b16 %v491, %v490
    %524 = vmatprep.subr.bf16.mxu0 0
    %525 = vmatpush1.bf16.msra.mxu0 %v499
    %526 = vmatprep.subr.bf16.mxu0 0
    %527 = vmatpush1.bf16.msra.mxu0 %v498
    %528 = vmatprep.subr.bf16.mxu0 0
    %529 = vmatpush1.bf16.msra.mxu0 %v497
    %530 = vmatprep.subr.bf16.mxu0 0
    %531 = vmatpush1.bf16.msra.mxu0 %v496
    %532 = vmatprep.subr.bf16.mxu0 0
    %533 = vmatpush1.bf16.msra.mxu0 %v495
    %534 = vmatprep.subr.bf16.mxu0 0
    %535 = vmatpush1.bf16.msra.mxu0 %v494
    %536 = vmatprep.subr.bf16.mxu0 0
    %537 = vmatpush1.bf16.msra.mxu0 %v493
    %538 = vmatprep.subr.bf16.mxu0 0
    %539 = vmatpush1.bf16.msra.mxu0 %v492
    %540 = vmatprep.subr.bf16.mxu0 0
    %541 = vmatpush2.bf16.msra.mxu0 %v507
    %542 = vmatprep.subr.bf16.mxu0 0
    %543 = vmatpush2.bf16.msra.mxu0 %v506
    %544 = vmatprep.subr.bf16.mxu0 0
    %545 = vmatpush2.bf16.msra.mxu0 %v505
    %546 = vmatprep.subr.bf16.mxu0 0
    %547 = vmatpush2.bf16.msra.mxu0 %v504
    %548 = vmatprep.subr.bf16.mxu0 0
    %549 = vmatpush2.bf16.msra.mxu0 %v503
    %550 = vmatprep.subr.bf16.mxu0 0
    %551 = vmatpush2.bf16.msra.mxu0 %v502
    %552 = vmatprep.subr.bf16.mxu0 0
    %553 = vmatpush2.bf16.msra.mxu0 %v501
    %554 = vmatprep.subr.bf16.mxu0 0
    %555 = vmatpush2.bf16.msra.mxu0 %v500
    %556 = vmatprep.mubr.bf16.mxu0 %v388
    %557 = vmatmul.mubr.bf16.gmra.mxu0 %v387
    %v558 = vpop.f32.mrf.mxu0
    %v559 = vadd.f32 %v426, %v558
    %v560 = vpop.f32.mrf.mxu0
    %v561 = vpop.f32.mrf.mxu0
    %v562 = vpop.f32.mrf.mxu0
    %563 = vdwg.mxu0
    %vm564 = vcmask 64512
    %565 = vst.msk [vmem:[#allocation5] sm:$0xff] %vm564, %v559
    // Predicated region
    $region30: #{tpu_custom_call.1} parent=1 // pred_check
      _
    $region31: #{tpu_custom_call.1} parent=1 // pred_check_branch
      %567 = sbr.rel (0) target = $region33
    $region32: #{tpu_custom_call.1} parent=1 // pred_region
      %s569 = ssub.s32 128, 128
      %570 = vsyncadd [#allocation4], %s569
      %s572 = sshll.u32 [#allocation5], 4
      %s573 = int_to_ptr.vmem [resolvable:$true] %s572
      %575 = dma.vmem_to_hbm [thread:$0]  %s573, 128, %s6, [#allocation4]
    $region33: #{tpu_custom_call.1} parent=1 // pred_fallthru
      _
    // Predicated region
    $region34: #{tpu_custom_call.1} parent=1 // pred_check
      _
    $region35: #{tpu_custom_call.1} parent=1 // pred_check_branch
      %577 = sbr.rel (0) target = $region37
    $region36: #{tpu_custom_call.1} parent=1 // pred_region
      %578 = dma.done [#allocation4], 128
    $region37: #{tpu_custom_call.1} parent=1 // pred_fallthru
      _
    %579 = vsyncpa [#allocation3], 1
    %580 = vsyncpa [#allocation4], 1

</llo_original>
